<compile_context>
chip_gen: v5e
topology: v5e:2x2
jax: 0.10.0
libtpu: 0.0.40
codegen_flags: <defaults>
</compile_context>

<pallas_src>
import math
import numpy as np

import jax
import jax.numpy as jnp
from jax import lax
from jax.experimental import pallas as pl
from jax.experimental.pallas import tpu as pltpu


_NEG_BIG = -1e30  # padded-row mask: exp(_NEG_BIG + finite) == 0 in f32


def _round_up(x, m):
    return ((x + m - 1) // m) * m


def _vmem_budget_bytes():
    """Per-generation VMEM budget, leaving headroom for compiler scratch."""
    try:
        if jax.devices()[0].platform == "tpu":
            cap = int(pltpu.get_tpu_info().vmem_capacity_bytes)  # 128MiB v5e/v6e, 64MiB v7x
            if cap > (24 << 20):
                return int(min(cap - (16 << 20), 96 << 20))
    except Exception:
        pass
    return 32 << 20  # conservative fallback (CPU interpret / unknown chip)


def _choose_square_tile(n, Dp, block_rows, budget):
    """Largest 128-multiple row tile T <= block_rows whose (T, T) step fits."""
    T = min(_round_up(max(block_rows, 128), 128), _round_up(max(n, 1), 128))

    def est(t):
        io = 2 * 4 * (2 * t * Dp + t * 128)   # double-buffered in/out tiles, f32
        tmp = 4 * 4 * t * t                   # logits / exp / partial-sum temps
        return io + tmp

    while T > 128 and est(T) > 0.6 * budget:
        T = max(128, (T // 2 // 128) * 128)
    return T


# --------------------------------------------------------------------------
# Kernels
# --------------------------------------------------------------------------
def _sym_rowsum_kernel(ii_ref, jj_ref, a_ref, b_ref, o_ref):
    """One upper-triangular (i, j) tile of the symmetric Gram sum.

    logits come straight from the MXU (norm terms are folded into augmented
    columns).  Per-row partial sums of exp(logits) accumulate into the (T,128)
    output block, which is resident across the consecutive j steps of a given
    i.  Off-diagonal tiles are weighted x2 for their mirrored lower-triangular
    twin — only valid because the wrapper reduces everything to one scalar.
    """
    s = pl.program_id(0)          # all program_id reads stay at top level
    i = ii_ref[s]
    j = jj_ref[s]

    @pl.when(j == i)              # first tile of this output row-block
    def _init():
        o_ref[...] = jnp.zeros_like(o_ref)

    logits = lax.dot_general(a_ref[...], b_ref[...], (((1,), (1,)), ((), ())),
                             preferred_element_type=jnp.float32)      # (T, T)
    rowsum = jnp.sum(jnp.exp(logits), axis=-1, keepdims=True)         # (T, 1)
    w = jnp.where(j > i, 2.0, 1.0).astype(jnp.float32)
    o_ref[...] = o_ref[...] + rowsum * w      # broadcast over 128 dense lanes


def _cross_rowsum_kernel(a_ref, b_ref, o_ref):
    """One (i, j) tile of the non-symmetric (Gxz) Gram sum."""
    j = pl.program_id(1)

    @pl.when(j == 0)
    def _init():
        o_ref[...] = jnp.zeros_like(o_ref)

    logits = lax.dot_general(a_ref[...], b_ref[...], (((1,), (1,)), ((), ())),
                             preferred_element_type=jnp.float32)      # (TM, TN)
    o_ref[...] = o_ref[...] + jnp.sum(jnp.exp(logits), axis=-1, keepdims=True)


# --------------------------------------------------------------------------
# Wrappers
# --------------------------------------------------------------------------
def _sym_pairwise_sum(left, right, T, vmem_limit):
    """sum_ij exp(logits) over the symmetric pairwise matrix (triangular grid)."""
    n_pad, Dp = left.shape
    nt = n_pad // T
    tri = [(i, j) for i in range(nt) for j in range(i, nt)]
    ii = jnp.asarray(np.asarray([t[0] for t in tri], np.int32))
    jj = jnp.asarray(np.asarray([t[1] for t in tri], np.int32))

    out = pl.pallas_call(
        _sym_rowsum_kernel,
        out_shape=jax.ShapeDtypeStruct((n_pad, 128), jnp.float32),
        grid_spec=pltpu.PrefetchScalarGridSpec(
            num_scalar_prefetch=2,
            grid=(len(tri),),
            in_specs=[
                pl.BlockSpec((T, Dp), lambda s, ii, jj: (ii[s], 0)),   # left tile
                pl.BlockSpec((T, Dp), lambda s, ii, jj: (jj[s], 0)),   # right tile
            ],
            out_specs=pl.BlockSpec((T, 128), lambda s, ii, jj: (ii[s], 0)),
        ),
        compiler_params=pltpu.CompilerParams(
            dimension_semantics=("arbitrary",),
            vmem_limit_bytes=vmem_limit,
        ),
    )(ii, jj, left, right)
    # Padded rows contribute exactly 0; lanes are replicated, take lane 0.
    return jnp.sum(out[:, 0])


def _cross_pairwise_sum(left, right, TM, TN, vmem_limit):
    """sum_ij exp(logits) over the full (non-symmetric) pairwise matrix."""
    n_pad, Dp = left.shape
    m_pad, _ = right.shape
    out = pl.pallas_call(
        _cross_rowsum_kernel,
        out_shape=jax.ShapeDtypeStruct((n_pad, 128), jnp.float32),
        grid=(n_pad // TM, m_pad // TN),
        in_specs=[
            pl.BlockSpec((TM, Dp), lambda i, j: (i, 0)),
            pl.BlockSpec((TN, Dp), lambda i, j: (j, 0)),
        ],
        out_specs=pl.BlockSpec((TM, 128), lambda i, j: (i, 0)),
        compiler_params=pltpu.CompilerParams(
            dimension_semantics=("parallel", "arbitrary"),
            vmem_limit_bytes=vmem_limit,
        ),
    )(left, right)
    return jnp.sum(out[:, 0])


def _pad_and_augment(P, n_pad, Dp, inv_k):
    """Build the left/right augmented operands (n_pad, Dp):

        left_i  = [ 2 p_i / ksize,  -||p_i||^2/ksize,  1,                0... ]
        right_j = [ p_j,             1,                -||p_j||^2/ksize, 0... ]

    so  left_i . right_j == -(||p_i||^2 + ||p_j||^2 - 2 p_i.p_j) / ksize.
    Padded rows put -1e30 in their norm slot, so any pairing with a padded
    row/col gives exp(logits) == 0 (exact means, no padding bias)."""
    n, d = P.shape
    P32 = P.astype(jnp.float32)
    data = jnp.zeros((n_pad, d), jnp.float32).at[:n].set(P32)
    neg_norm = -jnp.sum(P32 * P32, axis=-1) * inv_k                   # (n,)
    valid = jnp.arange(n_pad) < n
    norm_col = jnp.where(valid, jnp.pad(neg_norm, (0, n_pad - n)), _NEG_BIG)[:, None]
    ones_col = jnp.ones((n_pad, 1), jnp.float32)
    tail = jnp.zeros((n_pad, Dp - d - 2), jnp.float32)
    left = jnp.concatenate([data * (2.0 * inv_k), norm_col, ones_col, tail], axis=1)
    right = jnp.concatenate([data, ones_col, norm_col, tail], axis=1)
    return left, right


def cs_loss(X, Z, ksize, *, block_rows=512):
    """Pallas implementation of csLoss.forward(X, Z).  X: (N, D), Z: (M, D)."""
    N, D = X.shape
    M, D2 = Z.shape
    assert D == D2, "feature dims must match"
    inv_k = 1.0 / float(ksize)
    norm = math.sqrt(2.0 * math.pi * float(ksize))

    Dp = _round_up(D + 2, 128)          # +2 lanes for the folded norm terms
    budget = _vmem_budget_bytes()
    T_x = _choose_square_tile(N, Dp, block_rows, budget)
    T_z = _choose_square_tile(M, Dp, block_rows, budget)
    N_pad = _round_up(N, T_x)
    M_pad = _round_up(M, T_z)

    # Pad + augment each input exactly once; reused across the 3 pallas_calls.
    X_left, X_right = _pad_and_augment(X, N_pad, Dp, inv_k)
    Z_left, Z_right = _pad_and_augment(Z, M_pad, Dp, inv_k)

    s_xx = _sym_pairwise_sum(X_left, X_right, T_x, budget)
    s_zz = _sym_pairwise_sum(Z_left, Z_right, T_z, budget)
    s_xz = _cross_pairwise_sum(X_left, Z_right, T_x, T_z, budget)

    # Tiny scalar epilogue (normalization + log/sqrt) stays in XLA.
    m_xx = s_xx / (norm * N * N)
    m_zz = s_zz / (norm * M * M)
    m_xz = s_xz / (norm * N * M)
    return jnp.log(jnp.sqrt(m_xx * m_zz + 1e-5) / (m_xz + 1e-5))


# --------------------------------------------------------------------------
# Pure-JAX reference + tests
# --------------------------------------------------------------------------
def _cs_loss_ref(X, Z, ksize):
    """Pure-JAX reference mirroring the PyTorch broadcast formulation."""
    def get_kernel(a, b):
        g = jnp.sum((a[:, None, :] - b[None, :, :]) ** 2, axis=-1)
        return jnp.exp(-g / ksize) / math.sqrt(2.0 * math.pi * ksize)

    gxx = get_kernel(X, X)
    gzz = get_kernel(Z, Z)
    gxz = get_kernel(X, Z)
    return jnp.log(
        jnp.sqrt(jnp.mean(gxx) * jnp.mean(gzz) + 1e-5) / (jnp.mean(gxz) + 1e-5)
    )


if __name__ == "__main__":
    key = jax.random.PRNGKey(0)
    k1, k2, k3, k4 = jax.random.split(key, 4)

    # Tolerances allow for the MXU's default f32 matmul pass behaviour on real
    # hardware (exact in interpret mode); real bugs show up orders larger.
    ATOL = RTOL = 2e-3

    # Test 1: tiny shapes — single tile per pairwise matrix.
    N, M, D = 8, 8, 32
    ksize = 64.0
    X = jax.random.normal(k1, (N, D), dtype=jnp.float32)
    Z = jax.random.normal(k2, (M, D), dtype=jnp.float32)
    r = cs_loss(X, Z, ksize)
    jax.block_until_ready(r)
    r_ref = _cs_loss_ref(X, Z, ksize)
    assert jnp.allclose(r, r_ref, atol=ATOL, rtol=RTOL), (r, r_ref)

    # Test 2: non-tile-multiple shapes with 128-row tiles — exercises padding
    # masks, the triangular multi-tile accumulation and the 2-D cross grid.
    N2, M2, D2 = 160, 300, 40
    ksize2 = 80.0
    X2 = jax.random.normal(k3, (N2, D2), dtype=jnp.float32)
    Z2 = jax.random.normal(k4, (M2, D2), dtype=jnp.float32)
    r2 = cs_loss(X2, Z2, ksize2, block_rows=128)
    jax.block_until_ready(r2)
    r2_ref = _cs_loss_ref(X2, Z2, ksize2)
    assert jnp.allclose(r2, r2_ref, atol=ATOL, rtol=RTOL), (r2, r2_ref)

    print("KERNEL_OK")
</pallas_src>

<mosaic_0001>
module attributes {stable_mosaic.version = 11 : i64} {
  func.func @_sym_rowsum_kernel(%arg0: i32, %arg1: memref<1xi32, #tpu.memory_space<smem>>, %arg2: memref<1xi32, #tpu.memory_space<smem>>, %arg3: memref<128x128xf32, #tpu.memory_space<vmem>>, %arg4: memref<128x128xf32, #tpu.memory_space<vmem>>, %arg5: memref<128x128xf32, #tpu.memory_space<vmem>>) attributes {dimension_semantics = [#tpu.dimension_semantics<arbitrary>], iteration_bounds = array<i64: 1>, scalar_prefetch = 2 : i64, scratch_operands = 0 : i64, tpu.core_type = #tpu.core_type<tc>, window_params = [{transform_indices = @transform_0, window_bounds = array<i64: 128, 128>}, {transform_indices = @transform_1, window_bounds = array<i64: 128, 128>}, {transform_indices = @transform_2, window_bounds = array<i64: 128, 128>}]} {
    %0 = arith.index_cast %arg0 : i32 to index
    %1 = memref.load %arg1[%0] : memref<1xi32, #tpu.memory_space<smem>>
    %2 = arith.index_cast %arg0 : i32 to index
    %3 = memref.load %arg2[%2] : memref<1xi32, #tpu.memory_space<smem>>
    %4 = arith.cmpi eq, %3, %1 : i32
    %5 = arith.extui %4 : i1 to i32
    %c0_i32 = arith.constant 0 : i32
    %6 = arith.cmpi ne, %5, %c0_i32 : i32
    scf.if %6 {
      %cst_10 = arith.constant 0.000000e+00 : f32
      %21 = vector.broadcast %cst_10 : f32 to vector<128x128xf32>
      %c0_11 = arith.constant 0 : index
      %c0_12 = arith.constant 0 : index
      %22 = vector.load %arg5[%c0_11, %c0_12] : memref<128x128xf32, #tpu.memory_space<vmem>>, vector<128x128xf32>
      tpu.vector_store %arg5[%c0_11, %c0_12], %21 {strides = array<i32>} : memref<128x128xf32, #tpu.memory_space<vmem>>, vector<128x128xf32>,
    } else {
    }
    %c0 = arith.constant 0 : index
    %c0_0 = arith.constant 0 : index
    %7 = vector.load %arg3[%c0, %c0_0] : memref<128x128xf32, #tpu.memory_space<vmem>>, vector<128x128xf32>
    %c0_1 = arith.constant 0 : index
    %c0_2 = arith.constant 0 : index
    %8 = vector.load %arg4[%c0_1, %c0_2] : memref<128x128xf32, #tpu.memory_space<vmem>>, vector<128x128xf32>
    %cst = arith.constant dense<0.000000e+00> : vector<128x128xf32>
    %9 = tpu.matmul %7, %8, %cst {dimension_numbers = #tpu.dot_dimension_numbers<[1], [1], [0], [0], [0, 0, 1, 0], [], []>} : vector<128x128xf32>, vector<128x128xf32>, vector<128x128xf32> -> vector<128x128xf32>
    %10 = math.exp %9 : vector<128x128xf32>
    %cst_3 = arith.constant dense<0.000000e+00> : vector<128xf32>
    %11 = vector.multi_reduction <add>, %10, %cst_3 [1] : vector<128x128xf32> to vector<128xf32>
    %12 = vector.shape_cast %11 : vector<128xf32> to vector<128x1xf32>
    %13 = arith.cmpi sgt, %3, %1 : i32
    %cst_4 = arith.constant 2.000000e+00 : f32
    %cst_5 = arith.constant 1.000000e+00 : f32
    %14 = arith.select %13, %cst_4, %cst_5 : f32
    %c0_6 = arith.constant 0 : index
    %c0_7 = arith.constant 0 : index
    %15 = vector.load %arg5[%c0_6, %c0_7] : memref<128x128xf32, #tpu.memory_space<vmem>>, vector<128x128xf32>
    %16 = vector.broadcast %14 : f32 to vector<128x1xf32>
    %17 = arith.mulf %12, %16 : vector<128x1xf32>
    %18 = vector.broadcast %17 : vector<128x1xf32> to vector<128x128xf32>
    %19 = arith.addf %15, %18 : vector<128x128xf32>
    %c0_8 = arith.constant 0 : index
    %c0_9 = arith.constant 0 : index
    %20 = vector.load %arg5[%c0_8, %c0_9] : memref<128x128xf32, #tpu.memory_space<vmem>>, vector<128x128xf32>
    tpu.vector_store %arg5[%c0_8, %c0_9], %19 {strides = array<i32>} : memref<128x128xf32, #tpu.memory_space<vmem>>, vector<128x128xf32>,
    return
  }
  func.func @transform_0(%arg0: i32, %arg1: memref<1xi32, #tpu.memory_space<smem>>, %arg2: memref<1xi32, #tpu.memory_space<smem>>) -> (i32, i32) {
    %0 = arith.index_cast %arg0 : i32 to index
    %1 = memref.load %arg1[%0] : memref<1xi32, #tpu.memory_space<smem>>
    %c0_i32 = arith.constant 0 : i32
    %c0_i32_0 = arith.constant 0 : i32
    return %1, %c0_i32 : i32, i32
  }
  func.func @transform_1(%arg0: i32, %arg1: memref<1xi32, #tpu.memory_space<smem>>, %arg2: memref<1xi32, #tpu.memory_space<smem>>) -> (i32, i32) {
    %0 = arith.index_cast %arg0 : i32 to index
    %1 = memref.load %arg2[%0] : memref<1xi32, #tpu.memory_space<smem>>
    %c0_i32 = arith.constant 0 : i32
    %c0_i32_0 = arith.constant 0 : i32
    return %1, %c0_i32 : i32, i32
  }
  func.func @transform_2(%arg0: i32, %arg1: memref<1xi32, #tpu.memory_space<smem>>, %arg2: memref<1xi32, #tpu.memory_space<smem>>) -> (i32, i32) {
    %0 = arith.index_cast %arg0 : i32 to index
    %1 = memref.load %arg1[%0] : memref<1xi32, #tpu.memory_space<smem>>
    %c0_i32 = arith.constant 0 : i32
    %c0_i32_0 = arith.constant 0 : i32
    return %1, %c0_i32 : i32, i32
  }
}

</mosaic_0001>

<llo_original>
// kernel: tpu_custom_call.1
$region0: #{tpu_custom_call.1}
  #allocation0 [shape = 'u32[]', space=smem, size = 0x4, offset = 0x4, fixed_abs, tag = 'smem constant byte address 0x4 - core index']
  #allocation1 [shape = 'u32[72,128]{1,0:T(1,128)}', space=vmem, size = 0x9000, scoped, tag = 'internal scratch']
  #allocation2 [shape = 's32[1]{0}', space=sflag, size = 0x4, scoped, tag = 'scoped memory for tpu_custom_call.1']
  #allocation3 [shape = 's32[1]{0:T(128)S(6)}', space=smem, size = 0x200, scoped, tag = 'prefetched SMEM operand 0']
  #allocation4 [shape = 's32[1]{0:T(128)S(6)}', space=smem, size = 0x200, scoped, tag = 'prefetched SMEM operand 1']
  %s0 = inlined_call_operand.<no memory space> [shape: s32[1], index: 0, kind: input, shape index: {}]
  %s1 = inlined_call_operand.<no memory space> [shape: s32[1], index: 1, kind: input, shape index: {}]
  %s2 = inlined_call_operand.hbm [shape: f32[128,128], index: 2, kind: input, shape index: {}]
  %s3 = inlined_call_operand.hbm [shape: f32[128,128], index: 3, kind: input, shape index: {}]
  %s4 = inlined_call_operand.hbm [shape: f32[128,128], index: 4, kind: output, shape index: {}]
  %s5 = sld [smem:[#allocation0]]
  $region30: #{tpu_custom_call.1} parent=0
    _
  %s7 = ssub.s32 1, %s5
  %s8 = scalar_select 0, %s7, %s5
  %9 = sst [smem:[#allocation3]] %s0
  %10 = sst [smem:[#allocation4]] %s1
  $region1: #{tpu_custom_call.1} parent=0
    #allocation5 [shape = 'u8[65536]{0}', space=vmem, size = 0x10000, scoped, tag = 'input window, operand 2, single buffered']
    #allocation6 [shape = 's32[1]{0}', space=sflag, size = 0x4, scoped, tag = 'scoped memory for tpu_custom_call.1']
    #allocation7 [shape = 's32[1]{0}', space=sflag, size = 0x4, scoped, tag = 'scoped memory for tpu_custom_call.1']
    #allocation8 [shape = 'u8[65536]{0}', space=vmem, size = 0x10000, scoped, tag = 'input window, operand 3, single buffered']
    #allocation9 [shape = 's32[1]{0}', space=sflag, size = 0x4, scoped, tag = 'scoped memory for tpu_custom_call.1']
    #allocation10 [shape = 'u8[65536]{0}', space=vmem, size = 0x10000, scoped, tag = 'output window, operand 0, single buffered']
    %11 = vsyncpa [#allocation6], 0
    %12 = vsyncpa [#allocation9], 0
    %13 = vsyncpa [#allocation7], 0
    // Predicated region
    $region2: #{tpu_custom_call.1} parent=1 // pred_check
      _
    $region3: #{tpu_custom_call.1} parent=1 // pred_check_branch
      %15 = sbr.rel (0) target = $region5
    $region4: #{tpu_custom_call.1} parent=1 // pred_region
      %s16 = sld [smem:[#allocation3]]
      %s17 = smul.u32 16, %s16
      %19 = vsyncadd [#allocation6], 0
      %s20 = smul.addr %s17, 8
      %s21 = scalar_lea.hbm %s2, %s20
      %s22 = sshll.u32 %s21, 4
      %s23 = int_to_ptr.hbm [resolvable:$true] %s22
      %s24 = sshll.u32 [#allocation5], 4
      %s25 = int_to_ptr.vmem [resolvable:$true] %s24
      %30 = dma.hbm_to_vmem [thread:$0]  %s23, 2048, %s25, [#allocation6], 128, 128, 8
    $region5: #{tpu_custom_call.1} parent=1 // pred_fallthru
      _
    // Predicated region
    $region6: #{tpu_custom_call.1} parent=1 // pred_check
      _
    $region7: #{tpu_custom_call.1} parent=1 // pred_check_branch
      %32 = sbr.rel (0) target = $region9
    $region8: #{tpu_custom_call.1} parent=1 // pred_region
      %s33 = sld [smem:[#allocation4]]
      %s34 = smul.u32 16, %s33
      %36 = vsyncadd [#allocation9], 0
      %s37 = smul.addr %s34, 8
      %s38 = scalar_lea.hbm %s3, %s37
      %s39 = sshll.u32 %s38, 4
      %s40 = int_to_ptr.hbm [resolvable:$true] %s39
      %s41 = sshll.u32 [#allocation8], 4
      %s42 = int_to_ptr.vmem [resolvable:$true] %s41
      %47 = dma.hbm_to_vmem [thread:$0]  %s40, 2048, %s42, [#allocation9], 128, 128, 8
    $region9: #{tpu_custom_call.1} parent=1 // pred_fallthru
      _
    // Predicated region
    $region10: #{tpu_custom_call.1} parent=1 // pred_check
      _
    $region11: #{tpu_custom_call.1} parent=1 // pred_check_branch
      %49 = sbr.rel (0) target = $region13
    $region12: #{tpu_custom_call.1} parent=1 // pred_region
      %51 = dma.done [#allocation6], 2048
    $region13: #{tpu_custom_call.1} parent=1 // pred_fallthru
      _
    // Predicated region
    $region14: #{tpu_custom_call.1} parent=1 // pred_check
      _
    $region15: #{tpu_custom_call.1} parent=1 // pred_check_branch
      %53 = sbr.rel (0) target = $region17
    $region16: #{tpu_custom_call.1} parent=1 // pred_region
      %55 = dma.done [#allocation9], 2048
    $region17: #{tpu_custom_call.1} parent=1 // pred_fallthru
      _
    %s56 = sld [smem:[#allocation3]]
    %s57 = smul.u32 16, %s56
    %s58 = sld [smem:[#allocation4]]
    %s59 = smul.u32 16, %s58
    %s60 = sld [smem:[#allocation3]]
    %s61 = smul.u32 16, %s60
    %s62 = sld [smem:[#allocation3]]
    %s63 = sld [smem:[#allocation4]]
    %p64 = scmp.eq.s32.totalorder %s63, %s62
    // Predicated region
    $region18: #{tpu_custom_call.1} parent=1 // pred_check
      %p65 = pneg %p64
    $region19: #{tpu_custom_call.1} parent=1 // pred_check_branch
      %67 = sbr.rel (%p65) target = $region21
    $region20: #{tpu_custom_call.1} parent=1 // pred_region
      %68 = vst [vmem:[#allocation10] sm:$0xff] 0.0
      %69 = vst [vmem:[#allocation10 + $0x8] sm:$0xff] 0.0
      %70 = vst [vmem:[#allocation10 + $0x10] sm:$0xff] 0.0
      %71 = vst [vmem:[#allocation10 + $0x18] sm:$0xff] 0.0
      %72 = vst [vmem:[#allocation10 + $0x20] sm:$0xff] 0.0
      %73 = vst [vmem:[#allocation10 + $0x28] sm:$0xff] 0.0
      %74 = vst [vmem:[#allocation10 + $0x30] sm:$0xff] 0.0
      %75 = vst [vmem:[#allocation10 + $0x38] sm:$0xff] 0.0
      %76 = vst [vmem:[#allocation10 + $0x40] sm:$0xff] 0.0
      %77 = vst [vmem:[#allocation10 + $0x48] sm:$0xff] 0.0
      %78 = vst [vmem:[#allocation10 + $0x50] sm:$0xff] 0.0
      %79 = vst [vmem:[#allocation10 + $0x58] sm:$0xff] 0.0
      %80 = vst [vmem:[#allocation10 + $0x60] sm:$0xff] 0.0
      %81 = vst [vmem:[#allocation10 + $0x68] sm:$0xff] 0.0
      %82 = vst [vmem:[#allocation10 + $0x70] sm:$0xff] 0.0
      %83 = vst [vmem:[#allocation10 + $0x78] sm:$0xff] 0.0
    $region21: #{tpu_custom_call.1} parent=1 // pred_fallthru
      _
    %v84 = vld [vmem:[#allocation5] sm:$0xff]
    %v85 = vld [vmem:[#allocation5 + $0x8] sm:$0xff]
    %v86 = vld [vmem:[#allocation5 + $0x10] sm:$0xff]
    %v87 = vld [vmem:[#allocation5 + $0x18] sm:$0xff]
    %v88 = vld [vmem:[#allocation5 + $0x20] sm:$0xff]
    %v89 = vld [vmem:[#allocation5 + $0x28] sm:$0xff]
    %v90 = vld [vmem:[#allocation5 + $0x30] sm:$0xff]
    %v91 = vld [vmem:[#allocation5 + $0x38] sm:$0xff]
    %v92 = vld [vmem:[#allocation5 + $0x40] sm:$0xff]
    %v93 = vld [vmem:[#allocation5 + $0x48] sm:$0xff]
    %v94 = vld [vmem:[#allocation5 + $0x50] sm:$0xff]
    %v95 = vld [vmem:[#allocation5 + $0x58] sm:$0xff]
    %v96 = vld [vmem:[#allocation5 + $0x60] sm:$0xff]
    %v97 = vld [vmem:[#allocation5 + $0x68] sm:$0xff]
    %v98 = vld [vmem:[#allocation5 + $0x70] sm:$0xff]
    %v99 = vld [vmem:[#allocation5 + $0x78] sm:$0xff]
    %v100 = vld [vmem:[#allocation8] sm:$0xff]
    %v101 = vld [vmem:[#allocation8 + $0x8] sm:$0xff]
    %v102 = vld [vmem:[#allocation8 + $0x10] sm:$0xff]
    %v103 = vld [vmem:[#allocation8 + $0x18] sm:$0xff]
    %v104 = vld [vmem:[#allocation8 + $0x20] sm:$0xff]
    %v105 = vld [vmem:[#allocation8 + $0x28] sm:$0xff]
    %v106 = vld [vmem:[#allocation8 + $0x30] sm:$0xff]
    %v107 = vld [vmem:[#allocation8 + $0x38] sm:$0xff]
    %v108 = vld [vmem:[#allocation8 + $0x40] sm:$0xff]
    %v109 = vld [vmem:[#allocation8 + $0x48] sm:$0xff]
    %v110 = vld [vmem:[#allocation8 + $0x50] sm:$0xff]
    %v111 = vld [vmem:[#allocation8 + $0x58] sm:$0xff]
    %v112 = vld [vmem:[#allocation8 + $0x60] sm:$0xff]
    %v113 = vld [vmem:[#allocation8 + $0x68] sm:$0xff]
    %v114 = vld [vmem:[#allocation8 + $0x70] sm:$0xff]
    %v115 = vld [vmem:[#allocation8 + $0x78] sm:$0xff]
    %116 = vmatpush.xpose.msra.mxu0 %v115
    %117 = vmatpush.xpose.msra.mxu0 %v114
    %118 = vmatpush.xpose.msra.mxu0 %v113
    %119 = vmatpush.xpose.msra.mxu0 %v112
    %120 = vmatpush.xpose.msra.mxu0 %v111
    %121 = vmatpush.xpose.msra.mxu0 %v110
    %122 = vmatpush.xpose.msra.mxu0 %v109
    %123 = vmatpush.xpose.msra.mxu0 %v108
    %124 = vmatpush.xpose.msra.mxu0 %v107
    %125 = vmatpush.xpose.msra.mxu0 %v106
    %126 = vmatpush.xpose.msra.mxu0 %v105
    %127 = vmatpush.xpose.msra.mxu0 %v104
    %128 = vmatpush.xpose.msra.mxu0 %v103
    %129 = vmatpush.xpose.msra.mxu0 %v102
    %130 = vmatpush.xpose.msra.mxu0 %v101
    %131 = vmatpush.xpose.msra.mxu0 %v100
    %132 = vmatmul.f32.gmra.mxu0 %v84
    %v133 = vpop.f32.mrf.mxu0
    %v134 = vadd.f32 0.0, %v133
    %135 = vmatmul.f32.gmra.mxu0 %v85
    %v136 = vpop.f32.mrf.mxu0
    %v137 = vadd.f32 0.0, %v136
    %138 = vmatmul.f32.gmra.mxu0 %v86
    %v139 = vpop.f32.mrf.mxu0
    %v140 = vadd.f32 0.0, %v139
    %141 = vmatmul.f32.gmra.mxu0 %v87
    %v142 = vpop.f32.mrf.mxu0
    %v143 = vadd.f32 0.0, %v142
    %144 = vmatmul.f32.gmra.mxu0 %v88
    %v145 = vpop.f32.mrf.mxu0
    %v146 = vadd.f32 0.0, %v145
    %147 = vmatmul.f32.gmra.mxu0 %v89
    %v148 = vpop.f32.mrf.mxu0
    %v149 = vadd.f32 0.0, %v148
    %150 = vmatmul.f32.gmra.mxu0 %v90
    %v151 = vpop.f32.mrf.mxu0
    %v152 = vadd.f32 0.0, %v151
    %153 = vmatmul.f32.gmra.mxu0 %v91
    %v154 = vpop.f32.mrf.mxu0
    %v155 = vadd.f32 0.0, %v154
    %156 = vmatmul.f32.gmra.mxu0 %v92
    %v157 = vpop.f32.mrf.mxu0
    %v158 = vadd.f32 0.0, %v157
    %159 = vmatmul.f32.gmra.mxu0 %v93
    %v160 = vpop.f32.mrf.mxu0
    %v161 = vadd.f32 0.0, %v160
    %162 = vmatmul.f32.gmra.mxu0 %v94
    %v163 = vpop.f32.mrf.mxu0
    %v164 = vadd.f32 0.0, %v163
    %165 = vmatmul.f32.gmra.mxu0 %v95
    %v166 = vpop.f32.mrf.mxu0
    %v167 = vadd.f32 0.0, %v166
    %168 = vmatmul.f32.gmra.mxu0 %v96
    %v169 = vpop.f32.mrf.mxu0
    %v170 = vadd.f32 0.0, %v169
    %171 = vmatmul.f32.gmra.mxu0 %v97
    %v172 = vpop.f32.mrf.mxu0
    %v173 = vadd.f32 0.0, %v172
    %174 = vmatmul.f32.gmra.mxu0 %v98
    %v175 = vpop.f32.mrf.mxu0
    %v176 = vadd.f32 0.0, %v175
    %177 = vmatmul.f32.gmra.mxu0 %v99
    %v178 = vpop.f32.mrf.mxu0
    %v179 = vadd.f32 0.0, %v178
    %180 = vdwg.mxu0
    %v181 = vmul.f32 %v134, 1.442695
    %v182 = vpow.pop %v181
    %v183 = vmul.f32 %v137, 1.442695
    %v184 = vpow.pop %v183
    %v185 = vmul.f32 %v140, 1.442695
    %v186 = vpow.pop %v185
    %v187 = vmul.f32 %v143, 1.442695
    %v188 = vpow.pop %v187
    %v189 = vmul.f32 %v146, 1.442695
    %v190 = vpow.pop %v189
    %v191 = vmul.f32 %v149, 1.442695
    %v192 = vpow.pop %v191
    %v193 = vmul.f32 %v152, 1.442695
    %v194 = vpow.pop %v193
    %v195 = vmul.f32 %v155, 1.442695
    %v196 = vpow.pop %v195
    %v197 = vmul.f32 %v158, 1.442695
    %v198 = vpow.pop %v197
    %v199 = vmul.f32 %v161, 1.442695
    %v200 = vpow.pop %v199
    %v201 = vmul.f32 %v164, 1.442695
    %v202 = vpow.pop %v201
    %v203 = vmul.f32 %v167, 1.442695
    %v204 = vpow.pop %v203
    %v205 = vmul.f32 %v170, 1.442695
    %v206 = vpow.pop %v205
    %v207 = vmul.f32 %v173, 1.442695
    %v208 = vpow.pop %v207
    %v209 = vmul.f32 %v176, 1.442695
    %v210 = vpow.pop %v209
    %v211 = vmul.f32 %v179, 1.442695
    %v212 = vpow.pop %v211
    %213 = vadd.xlane.f32.xlu0 %v182
    %v214 = vpop.xlane.xlu0 %213
    %215 = vadd.xlane.f32.xlu0 %v184
    %v216 = vpop.xlane.xlu0 %215
    %217 = vadd.xlane.f32.xlu0 %v186
    %v218 = vpop.xlane.xlu0 %217
    %219 = vadd.xlane.f32.xlu0 %v188
    %v220 = vpop.xlane.xlu0 %219
    %221 = vadd.xlane.f32.xlu0 %v190
    %v222 = vpop.xlane.xlu0 %221
    %223 = vadd.xlane.f32.xlu0 %v192
    %v224 = vpop.xlane.xlu0 %223
    %225 = vadd.xlane.f32.xlu0 %v194
    %v226 = vpop.xlane.xlu0 %225
    %227 = vadd.xlane.f32.xlu0 %v196
    %v228 = vpop.xlane.xlu0 %227
    %229 = vadd.xlane.f32.xlu0 %v198
    %v230 = vpop.xlane.xlu0 %229
    %231 = vadd.xlane.f32.xlu0 %v200
    %v232 = vpop.xlane.xlu0 %231
    %233 = vadd.xlane.f32.xlu0 %v202
    %v234 = vpop.xlane.xlu0 %233
    %235 = vadd.xlane.f32.xlu0 %v204
    %v236 = vpop.xlane.xlu0 %235
    %237 = vadd.xlane.f32.xlu0 %v206
    %v238 = vpop.xlane.xlu0 %237
    %239 = vadd.xlane.f32.xlu0 %v208
    %v240 = vpop.xlane.xlu0 %239
    %241 = vadd.xlane.f32.xlu0 %v210
    %v242 = vpop.xlane.xlu0 %241
    %243 = vadd.xlane.f32.xlu0 %v212
    %v244 = vpop.xlane.xlu0 %243
    %p245 = scmp.gt.s32.totalorder %s63, %s62
    %s246 = scalar_select %p245, 2.0, 1.0
    %v247 = vld [vmem:[#allocation10] sm:$0xff]
    %v248 = vld [vmem:[#allocation10 + $0x8] sm:$0xff]
    %v249 = vld [vmem:[#allocation10 + $0x10] sm:$0xff]
    %v250 = vld [vmem:[#allocation10 + $0x18] sm:$0xff]
    %v251 = vld [vmem:[#allocation10 + $0x20] sm:$0xff]
    %v252 = vld [vmem:[#allocation10 + $0x28] sm:$0xff]
    %v253 = vld [vmem:[#allocation10 + $0x30] sm:$0xff]
    %v254 = vld [vmem:[#allocation10 + $0x38] sm:$0xff]
    %v255 = vld [vmem:[#allocation10 + $0x40] sm:$0xff]
    %v256 = vld [vmem:[#allocation10 + $0x48] sm:$0xff]
    %v257 = vld [vmem:[#allocation10 + $0x50] sm:$0xff]
    %v258 = vld [vmem:[#allocation10 + $0x58] sm:$0xff]
    %v259 = vld [vmem:[#allocation10 + $0x60] sm:$0xff]
    %v260 = vld [vmem:[#allocation10 + $0x68] sm:$0xff]
    %v261 = vld [vmem:[#allocation10 + $0x70] sm:$0xff]
    %v262 = vld [vmem:[#allocation10 + $0x78] sm:$0xff]
    %v263 = vstv %s246
    %v264 = vmul.f32 %v214, %v263
    %v265 = vmul.f32 %v216, %v263
    %v266 = vmul.f32 %v218, %v263
    %v267 = vmul.f32 %v220, %v263
    %v268 = vmul.f32 %v222, %v263
    %v269 = vmul.f32 %v224, %v263
    %v270 = vmul.f32 %v226, %v263
    %v271 = vmul.f32 %v228, %v263
    %v272 = vmul.f32 %v230, %v263
    %v273 = vmul.f32 %v232, %v263
    %v274 = vmul.f32 %v234, %v263
    %v275 = vmul.f32 %v236, %v263
    %v276 = vmul.f32 %v238, %v263
    %v277 = vmul.f32 %v240, %v263
    %v278 = vmul.f32 %v242, %v263
    %v279 = vmul.f32 %v244, %v263
    %v280 = vadd.f32 %v247, %v264
    %v281 = vadd.f32 %v248, %v265
    %v282 = vadd.f32 %v249, %v266
    %v283 = vadd.f32 %v250, %v267
    %v284 = vadd.f32 %v251, %v268
    %v285 = vadd.f32 %v252, %v269
    %v286 = vadd.f32 %v253, %v270
    %v287 = vadd.f32 %v254, %v271
    %v288 = vadd.f32 %v255, %v272
    %v289 = vadd.f32 %v256, %v273
    %v290 = vadd.f32 %v257, %v274
    %v291 = vadd.f32 %v258, %v275
    %v292 = vadd.f32 %v259, %v276
    %v293 = vadd.f32 %v260, %v277
    %v294 = vadd.f32 %v261, %v278
    %v295 = vadd.f32 %v262, %v279
    %296 = vst [vmem:[#allocation10] sm:$0xff] %v280
    %297 = vst [vmem:[#allocation10 + $0x8] sm:$0xff] %v281
    %298 = vst [vmem:[#allocation10 + $0x10] sm:$0xff] %v282
    %299 = vst [vmem:[#allocation10 + $0x18] sm:$0xff] %v283
    %300 = vst [vmem:[#allocation10 + $0x20] sm:$0xff] %v284
    %301 = vst [vmem:[#allocation10 + $0x28] sm:$0xff] %v285
    %302 = vst [vmem:[#allocation10 + $0x30] sm:$0xff] %v286
    %303 = vst [vmem:[#allocation10 + $0x38] sm:$0xff] %v287
    %304 = vst [vmem:[#allocation10 + $0x40] sm:$0xff] %v288
    %305 = vst [vmem:[#allocation10 + $0x48] sm:$0xff] %v289
    %306 = vst [vmem:[#allocation10 + $0x50] sm:$0xff] %v290
    %307 = vst [vmem:[#allocation10 + $0x58] sm:$0xff] %v291
    %308 = vst [vmem:[#allocation10 + $0x60] sm:$0xff] %v292
    %309 = vst [vmem:[#allocation10 + $0x68] sm:$0xff] %v293
    %310 = vst [vmem:[#allocation10 + $0x70] sm:$0xff] %v294
    %311 = vst [vmem:[#allocation10 + $0x78] sm:$0xff] %v295
    // Predicated region
    $region22: #{tpu_custom_call.1} parent=1 // pred_check
      _
    $region23: #{tpu_custom_call.1} parent=1 // pred_check_branch
      %313 = sbr.rel (0) target = $region25
    $region24: #{tpu_custom_call.1} parent=1 // pred_region
      %s314 = sld [smem:[#allocation3]]
      %s315 = smul.u32 16, %s314
      %317 = vsyncadd [#allocation7], 0
      %s318 = smul.addr %s315, 8
      %s319 = scalar_lea.hbm %s4, %s318
      %s320 = sshll.u32 [#allocation10], 4
      %s321 = int_to_ptr.vmem [resolvable:$true] %s320
      %s322 = sshll.u32 %s319, 4
      %s323 = int_to_ptr.hbm [resolvable:$true] %s322
      %328 = dma.vmem_to_hbm [thread:$0]  %s321, 2048, %s323, [#allocation7], 128, 128, 8
    $region25: #{tpu_custom_call.1} parent=1 // pred_fallthru
      _
    // Predicated region
    $region26: #{tpu_custom_call.1} parent=1 // pred_check
      _
    $region27: #{tpu_custom_call.1} parent=1 // pred_check_branch
      %330 = sbr.rel (0) target = $region29
    $region28: #{tpu_custom_call.1} parent=1 // pred_region
      %332 = dma.done [#allocation7], 2048
    $region29: #{tpu_custom_call.1} parent=1 // pred_fallthru
      _
    %333 = vsyncpa [#allocation6], 1
    %334 = vsyncpa [#allocation9], 1
    %335 = vsyncpa [#allocation7], 1

</llo_original>
